<compile_context>
chip_gen: v6e
topology: v6e:2x2x1
jax: 0.10.0
libtpu: 0.0.40
codegen_flags: <defaults>
</compile_context>

<pallas_src>
import functools

import jax
import jax.numpy as jnp
from jax.experimental import pallas as pl
from jax.experimental.pallas import tpu as pltpu


def _attention_kernel(x_ref, gamma_ref, beta_ref, wqkv_ref, wout_ref,
                      bout_ref, o_ref, *, heads, dim_head, eps, matmul_dtype):
    """Fused LayerNorm + QKV + MHSA + output projection for one batch element.

    x_ref    : (N, D)            input tokens (batch dim squeezed by BlockSpec)
    gamma_ref: (1, D)            LayerNorm weight
    beta_ref : (1, D)            LayerNorm bias
    wqkv_ref : (D, 3*inner)      fused QKV weight, pre-cast to matmul_dtype,
                                 softmax scale folded into the Q columns
    wout_ref : (inner, D)        output projection weight, pre-cast
    bout_ref : (1, D)            output projection bias
    o_ref    : (N, D)            output
    """
    N, D = x_ref.shape
    inner = heads * dim_head

    # ---- LayerNorm in f32 (biased variance, torch.nn.LayerNorm eps) ----
    x = x_ref[...].astype(jnp.float32)
    mean = jnp.mean(x, axis=-1, keepdims=True)
    var = jnp.mean(jnp.square(x - mean), axis=-1, keepdims=True)
    xn = (x - mean) * jax.lax.rsqrt(var + eps)
    xn = xn * gamma_ref[...].astype(jnp.float32) + beta_ref[...].astype(jnp.float32)

    xn_mm = xn.astype(matmul_dtype)

    # ---- One fused, lane-dense QKV projection.  Output stays in
    #      matmul_dtype so the scores / attn@V matmuls below also get
    #      low-precision MXU operands (f32 accumulation throughout). ----
    qkv = jnp.dot(xn_mm, wqkv_ref[...],
                  preferred_element_type=matmul_dtype)          # (N, 3*inner)

    # ---- Per-head attention core on static lane slices of qkv.
    #      heads is small & static; TODO(synk): fori_loop / grid axis at
    #      real heads=12 to bound live ranges. ----
    hv_list = []
    for h in range(heads):
        lo = h * dim_head
        q_h = qkv[:, lo:lo + dim_head]                          # (N, d)
        k_h = qkv[:, inner + lo:inner + lo + dim_head]          # (N, d)
        v_h = qkv[:, 2 * inner + lo:2 * inner + lo + dim_head]  # (N, d)

        # Scores (N, N), f32 accumulate; scale already folded into Q weights.
        s = jax.lax.dot_general(q_h, k_h, (((1,), (1,)), ((), ())),
                                preferred_element_type=jnp.float32)
        # Numerically-stable softmax numerator; normalisation deferred to hv.
        s = s - jnp.max(s, axis=-1, keepdims=True)
        e = jnp.exp(s)
        denom = jnp.sum(e, axis=-1, keepdims=True)              # (N, 1)

        hv = jax.lax.dot_general(e.astype(matmul_dtype), v_h,
                                 (((1,), (0,)), ((), ())),
                                 preferred_element_type=jnp.float32)  # (N, d)
        # Normalise after attn@V: N*d multiplies instead of N*N; approx
        # reciprocal rides the EUP slot.  dropout(p=0.0) == identity.
        hv = hv * pl.reciprocal(denom, approx=True)
        hv_list.append(hv.astype(matmul_dtype))

    # ---- Fused output projection: one K=inner matmul + bias, stored
    #      directly in the output dtype. ----
    hv_all = jnp.concatenate(hv_list, axis=-1)                  # (N, inner)
    out = jnp.dot(hv_all, wout_ref[...],
                  preferred_element_type=jnp.float32)           # (N, D) f32
    out = out + bout_ref[...].astype(jnp.float32)
    o_ref[...] = out.astype(o_ref.dtype)


def attention_forward(x, gamma, beta, wqkv, wout, bout, *, heads, dim_head,
                      matmul_dtype=jnp.bfloat16, eps=1e-5,
                      vmem_limit_bytes=None):
    """Run the fused attention kernel.

    matmul_dtype: operand dtype fed to the MXU (default bf16 on every chip
                  generation; LayerNorm/softmax math and all accumulation
                  stay f32).  Pass jnp.float32 for bit-closer parity with a
                  pure-f32 reference.
    """
    B, N, D = x.shape
    inner = heads * dim_head
    assert wqkv.shape == (D, 3 * inner)
    assert wout.shape == (inner, D)
    scale = dim_head ** (-0.5)
    mm_dtype = jnp.dtype(matmul_dtype)

    # Fold the softmax scale into the Q columns of the fused QKV weight and
    # pre-cast both matmul weights to the MXU operand dtype (done once, in
    # the wrapper, outside the kernel).
    col_scale = jnp.concatenate([
        jnp.full((inner,), scale, dtype=wqkv.dtype),
        jnp.ones((2 * inner,), dtype=wqkv.dtype),
    ])
    wqkv_mm = (wqkv * col_scale[None, :]).astype(mm_dtype)
    wout_mm = wout.astype(mm_dtype)

    kernel = functools.partial(_attention_kernel, heads=heads,
                               dim_head=dim_head, eps=eps,
                               matmul_dtype=mm_dtype)

    return pl.pallas_call(
        kernel,
        out_shape=jax.ShapeDtypeStruct((B, N, D), x.dtype),
        grid=(B,),
        in_specs=[
            # Batch dim squeezed: kernel sees a 2-D (N, D) tile per step.
            pl.BlockSpec((None, N, D), lambda b: (b, 0, 0)),        # x
            pl.BlockSpec((1, D), lambda b: (0, 0)),                 # gamma
            pl.BlockSpec((1, D), lambda b: (0, 0)),                 # beta
            # Constant index maps: weights stay resident, not re-DMA'd.
            pl.BlockSpec((D, 3 * inner), lambda b: (0, 0)),         # Wqkv
            pl.BlockSpec((inner, D), lambda b: (0, 0)),             # Wout
            pl.BlockSpec((1, D), lambda b: (0, 0)),                 # bout
        ],
        out_specs=pl.BlockSpec((None, N, D), lambda b: (b, 0, 0)),
        compiler_params=pltpu.CompilerParams(
            dimension_semantics=("parallel",),
            vmem_limit_bytes=vmem_limit_bytes),
    )(x, gamma, beta, wqkv_mm, wout_mm, bout)


def attention_reference(x, gamma, beta, wqkv, wout, bout, *, heads, dim_head):
    """Pure-JAX reference matching the PyTorch forward pass."""
    B, N, D = x.shape
    inner = heads * dim_head
    scale = dim_head ** (-0.5)
    mean = jnp.mean(x, axis=-1, keepdims=True)
    var = jnp.mean((x - mean) ** 2, axis=-1, keepdims=True)
    xn = (x - mean) * jax.lax.rsqrt(var + 1e-5) * gamma[0] + beta[0]
    qkv = xn @ wqkv                                      # (B, N, 3*inner)
    q, k, v = jnp.split(qkv, 3, axis=-1)

    def to_heads(t):
        return t.reshape(B, N, heads, dim_head).transpose(0, 2, 1, 3)

    q, k, v = map(to_heads, (q, k, v))                   # (B, h, N, d)
    dots = jnp.einsum('bhnd,bhmd->bhnm', q, k) * scale
    attn = jax.nn.softmax(dots, axis=-1)
    out = jnp.einsum('bhnm,bhmd->bhnd', attn, v)
    out = out.transpose(0, 2, 1, 3).reshape(B, N, inner)
    return out @ wout + bout[0]


if __name__ == "__main__":
    # Small shapes consistent with the module: dim=32, heads=2, dim_head=16
    B, N, D = 2, 8, 32
    HEADS, DIM_HEAD = 2, 16
    INNER = HEADS * DIM_HEAD

    key = jax.random.PRNGKey(0)
    kx, kq, ko, kb = jax.random.split(key, 4)

    x = jax.random.normal(kx, (B, N, D), dtype=jnp.float32)
    gamma = jnp.ones((1, D), dtype=jnp.float32)           # nn.LayerNorm weight
    beta = jnp.zeros((1, D), dtype=jnp.float32)           # nn.LayerNorm bias
    wqkv = jax.random.normal(kq, (D, 3 * INNER), dtype=jnp.float32) * 0.02
    wout = jax.random.normal(ko, (INNER, D), dtype=jnp.float32) * 0.02
    bout = jax.random.normal(kb, (1, D), dtype=jnp.float32) * 0.02

    ref = attention_reference(x, gamma, beta, wqkv, wout, bout,
                              heads=HEADS, dim_head=DIM_HEAD)

    # f32 MXU operands: tight check (only the approx reciprocal differs).
    out_f32 = attention_forward(x, gamma, beta, wqkv, wout, bout,
                                heads=HEADS, dim_head=DIM_HEAD,
                                matmul_dtype=jnp.float32)
    out_f32 = jax.block_until_ready(out_f32)
    assert out_f32.shape == (B, N, D)
    err_f32 = float(jnp.max(jnp.abs(out_f32 - ref)))
    assert jnp.allclose(out_f32, ref, atol=2e-3, rtol=2e-3), \
        f"f32 path mismatch vs reference (max abs err {err_f32})"

    # Default bf16 MXU operands: looser check (bf16 rounding on operands;
    # accumulation and LayerNorm/softmax remain f32).
    out_bf16 = attention_forward(x, gamma, beta, wqkv, wout, bout,
                                 heads=HEADS, dim_head=DIM_HEAD)
    out_bf16 = jax.block_until_ready(out_bf16)
    assert out_bf16.shape == (B, N, D)
    err_bf16 = float(jnp.max(jnp.abs(out_bf16 - ref)))
    assert jnp.allclose(out_bf16, ref, atol=1e-2, rtol=5e-2), \
        f"bf16 path mismatch vs reference (max abs err {err_bf16})"

    print("KERNEL_OK")
</pallas_src>

<mosaic_0001>
module attributes {stable_mosaic.version = 11 : i64} {
  func.func @_attention_kernel(%arg0: i32, %arg1: memref<1x8x32xf32, #tpu.memory_space<vmem>>, %arg2: memref<1x32xf32, #tpu.memory_space<vmem>>, %arg3: memref<1x32xf32, #tpu.memory_space<vmem>>, %arg4: memref<32x96xf32, #tpu.memory_space<vmem>>, %arg5: memref<32x32xf32, #tpu.memory_space<vmem>>, %arg6: memref<1x32xf32, #tpu.memory_space<vmem>>, %arg7: memref<1x8x32xf32, #tpu.memory_space<vmem>>) attributes {dimension_semantics = [#tpu.dimension_semantics<parallel>], iteration_bounds = array<i64: 2>, scalar_prefetch = 0 : i64, scratch_operands = 0 : i64, tpu.core_type = #tpu.core_type<tc>, window_params = [{transform_indices = @transform_0, window_bounds = array<i64: 1, 8, 32>}, {pipeline_mode = #tpu.pipeline_mode<synchronous>, transform_indices = @transform_1, window_bounds = array<i64: 1, 32>}, {pipeline_mode = #tpu.pipeline_mode<synchronous>, transform_indices = @transform_2, window_bounds = array<i64: 1, 32>}, {pipeline_mode = #tpu.pipeline_mode<synchronous>, transform_indices = @transform_3, window_bounds = array<i64: 32, 96>}, {pipeline_mode = #tpu.pipeline_mode<synchronous>, transform_indices = @transform_4, window_bounds = array<i64: 32, 32>}, {pipeline_mode = #tpu.pipeline_mode<synchronous>, transform_indices = @transform_5, window_bounds = array<i64: 1, 32>}, {transform_indices = @transform_6, window_bounds = array<i64: 1, 8, 32>}]} {
    %c0 = arith.constant 0 : index
    %c0_0 = arith.constant 0 : index
    %c0_1 = arith.constant 0 : index
    %0 = vector.load %arg1[%c0, %c0_0, %c0_1] : memref<1x8x32xf32, #tpu.memory_space<vmem>>, vector<1x8x32xf32>
    %1 = vector.shape_cast %0 : vector<1x8x32xf32> to vector<8x32xf32>
    %cst = arith.constant dense<0.000000e+00> : vector<8xf32>
    %2 = vector.multi_reduction <add>, %1, %cst [1] : vector<8x32xf32> to vector<8xf32>
    %3 = vector.shape_cast %2 : vector<8xf32> to vector<8x1xf32>
    %cst_2 = arith.constant 3.200000e+01 : f32
    %4 = vector.broadcast %cst_2 : f32 to vector<8x1xf32>
    %5 = arith.divf %3, %4 : vector<8x1xf32>
    %6 = vector.broadcast %5 : vector<8x1xf32> to vector<8x32xf32>
    %7 = arith.subf %1, %6 : vector<8x32xf32>
    %8 = arith.mulf %7, %7 : vector<8x32xf32>
    %cst_3 = arith.constant dense<0.000000e+00> : vector<8xf32>
    %9 = vector.multi_reduction <add>, %8, %cst_3 [1] : vector<8x32xf32> to vector<8xf32>
    %10 = vector.shape_cast %9 : vector<8xf32> to vector<8x1xf32>
    %cst_4 = arith.constant 3.200000e+01 : f32
    %11 = vector.broadcast %cst_4 : f32 to vector<8x1xf32>
    %12 = arith.divf %10, %11 : vector<8x1xf32>
    %13 = vector.broadcast %5 : vector<8x1xf32> to vector<8x32xf32>
    %14 = arith.subf %1, %13 : vector<8x32xf32>
    %cst_5 = arith.constant 9.99999974E-6 : f32
    %15 = vector.broadcast %cst_5 : f32 to vector<8x1xf32>
    %16 = arith.addf %12, %15 : vector<8x1xf32>
    %17 = math.rsqrt %16 : vector<8x1xf32>
    %18 = vector.broadcast %17 : vector<8x1xf32> to vector<8x32xf32>
    %19 = arith.mulf %14, %18 : vector<8x32xf32>
    %c0_6 = arith.constant 0 : index
    %c0_7 = arith.constant 0 : index
    %20 = vector.load %arg2[%c0_6, %c0_7] : memref<1x32xf32, #tpu.memory_space<vmem>>, vector<1x32xf32>
    %21 = vector.broadcast %20 : vector<1x32xf32> to vector<8x32xf32>
    %22 = arith.mulf %19, %21 : vector<8x32xf32>
    %c0_8 = arith.constant 0 : index
    %c0_9 = arith.constant 0 : index
    %23 = vector.load %arg3[%c0_8, %c0_9] : memref<1x32xf32, #tpu.memory_space<vmem>>, vector<1x32xf32>
    %24 = vector.broadcast %23 : vector<1x32xf32> to vector<8x32xf32>
    %25 = arith.addf %22, %24 : vector<8x32xf32>
    %c0_10 = arith.constant 0 : index
    %c0_11 = arith.constant 0 : index
    %26 = vector.load %arg4[%c0_10, %c0_11] : memref<32x96xf32, #tpu.memory_space<vmem>>, vector<32x96xf32>
    %cst_12 = arith.constant dense<0.000000e+00> : vector<8x96xf32>
    %27 = tpu.matmul %25, %26, %cst_12 {dimension_numbers = #tpu.dot_dimension_numbers<[1], [0], [0], [1], [0, 0, 1, 1], [], []>} : vector<8x32xf32>, vector<32x96xf32>, vector<8x96xf32> -> vector<8x96xf32>
    %28 = vector.extract_strided_slice %27 {offsets = [0, 0], sizes = [8, 16], strides = [1, 1]} : vector<8x96xf32> to vector<8x16xf32>
    %29 = vector.extract_strided_slice %27 {offsets = [0, 32], sizes = [8, 16], strides = [1, 1]} : vector<8x96xf32> to vector<8x16xf32>
    %30 = vector.extract_strided_slice %27 {offsets = [0, 64], sizes = [8, 16], strides = [1, 1]} : vector<8x96xf32> to vector<8x16xf32>
    %cst_13 = arith.constant dense<0.000000e+00> : vector<8x8xf32>
    %31 = tpu.matmul %28, %29, %cst_13 {dimension_numbers = #tpu.dot_dimension_numbers<[1], [1], [0], [0], [0, 0, 1, 0], [], []>} : vector<8x16xf32>, vector<8x16xf32>, vector<8x8xf32> -> vector<8x8xf32>
    %cst_14 = arith.constant dense<0xFF800000> : vector<8xf32>
    %32 = vector.multi_reduction <maximumf>, %31, %cst_14 [1] : vector<8x8xf32> to vector<8xf32>
    %33 = vector.shape_cast %32 : vector<8xf32> to vector<8x1xf32>
    %34 = vector.broadcast %33 : vector<8x1xf32> to vector<8x8xf32>
    %35 = arith.subf %31, %34 : vector<8x8xf32>
    %36 = math.exp %35 : vector<8x8xf32>
    %cst_15 = arith.constant dense<0.000000e+00> : vector<8xf32>
    %37 = vector.multi_reduction <add>, %36, %cst_15 [1] : vector<8x8xf32> to vector<8xf32>
    %38 = vector.shape_cast %37 : vector<8xf32> to vector<8x1xf32>
    %cst_16 = arith.constant dense<0.000000e+00> : vector<8x16xf32>
    %39 = tpu.matmul %36, %30, %cst_16 {dimension_numbers = #tpu.dot_dimension_numbers<[1], [0], [0], [1], [0, 0, 1, 1], [], []>} : vector<8x8xf32>, vector<8x16xf32>, vector<8x16xf32> -> vector<8x16xf32>
    %40 = tpu.reciprocal %38 {approx = true} : vector<8x1xf32> -> vector<8x1xf32>
    %41 = vector.broadcast %40 : vector<8x1xf32> to vector<8x16xf32>
    %42 = arith.mulf %39, %41 : vector<8x16xf32>
    %43 = vector.extract_strided_slice %27 {offsets = [0, 16], sizes = [8, 16], strides = [1, 1]} : vector<8x96xf32> to vector<8x16xf32>
    %44 = vector.extract_strided_slice %27 {offsets = [0, 48], sizes = [8, 16], strides = [1, 1]} : vector<8x96xf32> to vector<8x16xf32>
    %45 = vector.extract_strided_slice %27 {offsets = [0, 80], sizes = [8, 16], strides = [1, 1]} : vector<8x96xf32> to vector<8x16xf32>
    %cst_17 = arith.constant dense<0.000000e+00> : vector<8x8xf32>
    %46 = tpu.matmul %43, %44, %cst_17 {dimension_numbers = #tpu.dot_dimension_numbers<[1], [1], [0], [0], [0, 0, 1, 0], [], []>} : vector<8x16xf32>, vector<8x16xf32>, vector<8x8xf32> -> vector<8x8xf32>
    %cst_18 = arith.constant dense<0xFF800000> : vector<8xf32>
    %47 = vector.multi_reduction <maximumf>, %46, %cst_18 [1] : vector<8x8xf32> to vector<8xf32>
    %48 = vector.shape_cast %47 : vector<8xf32> to vector<8x1xf32>
    %49 = vector.broadcast %48 : vector<8x1xf32> to vector<8x8xf32>
    %50 = arith.subf %46, %49 : vector<8x8xf32>
    %51 = math.exp %50 : vector<8x8xf32>
    %cst_19 = arith.constant dense<0.000000e+00> : vector<8xf32>
    %52 = vector.multi_reduction <add>, %51, %cst_19 [1] : vector<8x8xf32> to vector<8xf32>
    %53 = vector.shape_cast %52 : vector<8xf32> to vector<8x1xf32>
    %cst_20 = arith.constant dense<0.000000e+00> : vector<8x16xf32>
    %54 = tpu.matmul %51, %45, %cst_20 {dimension_numbers = #tpu.dot_dimension_numbers<[1], [0], [0], [1], [0, 0, 1, 1], [], []>} : vector<8x8xf32>, vector<8x16xf32>, vector<8x16xf32> -> vector<8x16xf32>
    %55 = tpu.reciprocal %53 {approx = true} : vector<8x1xf32> -> vector<8x1xf32>
    %56 = vector.broadcast %55 : vector<8x1xf32> to vector<8x16xf32>
    %57 = arith.mulf %54, %56 : vector<8x16xf32>
    %58 = tpu.concatenate %42, %57 in 1 : vector<8x16xf32>, vector<8x16xf32> -> vector<8x32xf32>
    %c0_21 = arith.constant 0 : index
    %c0_22 = arith.constant 0 : index
    %59 = vector.load %arg5[%c0_21, %c0_22] : memref<32x32xf32, #tpu.memory_space<vmem>>, vector<32x32xf32>
    %cst_23 = arith.constant dense<0.000000e+00> : vector<8x32xf32>
    %60 = tpu.matmul %58, %59, %cst_23 {dimension_numbers = #tpu.dot_dimension_numbers<[1], [0], [0], [1], [0, 0, 1, 1], [], []>} : vector<8x32xf32>, vector<32x32xf32>, vector<8x32xf32> -> vector<8x32xf32>
    %c0_24 = arith.constant 0 : index
    %c0_25 = arith.constant 0 : index
    %61 = vector.load %arg6[%c0_24, %c0_25] : memref<1x32xf32, #tpu.memory_space<vmem>>, vector<1x32xf32>
    %62 = vector.broadcast %61 : vector<1x32xf32> to vector<8x32xf32>
    %63 = arith.addf %60, %62 : vector<8x32xf32>
    %c0_26 = arith.constant 0 : index
    %c0_27 = arith.constant 0 : index
    %c0_28 = arith.constant 0 : index
    %64 = vector.load %arg7[%c0_26, %c0_27, %c0_28] : memref<1x8x32xf32, #tpu.memory_space<vmem>>, vector<1x8x32xf32>
    %65 = vector.shape_cast %64 : vector<1x8x32xf32> to vector<8x32xf32>
    %66 = vector.shape_cast %63 : vector<8x32xf32> to vector<1x8x32xf32>
    tpu.vector_store %arg7[%c0_26, %c0_27, %c0_28], %66 {strides = array<i32>} : memref<1x8x32xf32, #tpu.memory_space<vmem>>, vector<1x8x32xf32>,
    return
  }
  func.func @transform_0(%arg0: i32) -> (i32, i32, i32) {
    %c0_i32 = arith.constant 0 : i32
    %c0_i32_0 = arith.constant 0 : i32
    %c0_i32_1 = arith.constant 0 : i32
    return %arg0, %c0_i32, %c0_i32_0 : i32, i32, i32
  }
  func.func @transform_1(%arg0: i32) -> (i32, i32) {
    %c0_i32 = arith.constant 0 : i32
    %c0_i32_0 = arith.constant 0 : i32
    %c0_i32_1 = arith.constant 0 : i32
    return %c0_i32, %c0_i32_0 : i32, i32
  }
  func.func @transform_2(%arg0: i32) -> (i32, i32) {
    %c0_i32 = arith.constant 0 : i32
    %c0_i32_0 = arith.constant 0 : i32
    %c0_i32_1 = arith.constant 0 : i32
    return %c0_i32, %c0_i32_0 : i32, i32
  }
  func.func @transform_3(%arg0: i32) -> (i32, i32) {
    %c0_i32 = arith.constant 0 : i32
    %c0_i32_0 = arith.constant 0 : i32
    %c0_i32_1 = arith.constant 0 : i32
    return %c0_i32, %c0_i32_0 : i32, i32
  }
  func.func @transform_4(%arg0: i32) -> (i32, i32) {
    %c0_i32 = arith.constant 0 : i32
    %c0_i32_0 = arith.constant 0 : i32
    %c0_i32_1 = arith.constant 0 : i32
    return %c0_i32, %c0_i32_0 : i32, i32
  }
  func.func @transform_5(%arg0: i32) -> (i32, i32) {
    %c0_i32 = arith.constant 0 : i32
    %c0_i32_0 = arith.constant 0 : i32
    %c0_i32_1 = arith.constant 0 : i32
    return %c0_i32, %c0_i32_0 : i32, i32
  }
  func.func @transform_6(%arg0: i32) -> (i32, i32, i32) {
    %c0_i32 = arith.constant 0 : i32
    %c0_i32_0 = arith.constant 0 : i32
    %c0_i32_1 = arith.constant 0 : i32
    return %arg0, %c0_i32, %c0_i32_0 : i32, i32, i32
  }
}

</mosaic_0001>

<llo_original>
// kernel: tpu_custom_call.1
$region0: #{tpu_custom_call.1}
  #allocation0 [shape = 'u32[]', space=smem, size = 0x4, offset = 0x4, fixed_abs, tag = 'smem constant byte address 0x4 - core index']
  #allocation1 [shape = 'u32[144,128]{1,0:T(1,128)}', space=vmem, size = 0x12000, scoped, tag = 'internal scratch']
  %s0 = inlined_call_operand.hbm [shape: f32[2,8,32], index: 0, kind: input, shape index: {}]
  %s1 = inlined_call_operand.vmem [shape: f32[1,32], index: 1, kind: input, shape index: {}]
  %s2 = inlined_call_operand.vmem [shape: f32[1,32], index: 2, kind: input, shape index: {}]
  %s3 = inlined_call_operand.hbm [shape: f32[32,96], index: 3, kind: input, shape index: {}]
  %s4 = inlined_call_operand.hbm [shape: f32[32,32], index: 4, kind: input, shape index: {}]
  %s5 = inlined_call_operand.vmem [shape: f32[1,32], index: 5, kind: input, shape index: {}]
  %s6 = inlined_call_operand.hbm [shape: f32[2,8,32], index: 6, kind: output, shape index: {}]
  %s7 = sld [smem:[#allocation0]]
  $region69: #{tpu_custom_call.1} parent=0
    _
  %s9 = ssub.s32 1, %s7
  %s10 = scalar_select 0, %s9, %s7
  $region1: #{tpu_custom_call.1} parent=0
    #allocation2 [shape = 'u8[8192]{0}', space=vmem, size = 0x2000, scoped, tag = 'input window, operand 0']
    #allocation3 [shape = 's32[2]{0}', space=sflag, size = 0x8, scoped, tag = 'scoped memory for tpu_custom_call.1']
    #allocation4 [shape = 's32[2]{0}', space=sflag, size = 0x8, scoped, tag = 'scoped memory for tpu_custom_call.1']
    #allocation5 [shape = 'u8[16384]{0}', space=vmem, size = 0x4000, scoped, tag = 'input window, operand 3, single buffered']
    #allocation6 [shape = 's32[1]{0}', space=sflag, size = 0x4, scoped, tag = 'scoped memory for tpu_custom_call.1']
    #allocation7 [shape = 'u8[16384]{0}', space=vmem, size = 0x4000, scoped, tag = 'input window, operand 4, single buffered']
    #allocation8 [shape = 'u8[8192]{0}', space=vmem, size = 0x2000, scoped, tag = 'output window, operand 0']
    %11 = vsyncpa [#allocation3], 0
    %s12 = scalar_lea.sflag [#allocation3], 1
    %13 = vsyncpa %s12, 0
    %14 = vsyncpa [#allocation6], 0
    %15 = vsyncpa [#allocation4], 0
    %s16 = scalar_lea.sflag [#allocation4], 1
    %17 = vsyncpa %s16, 0
    loop: start=0, step=1, limit=4
    $region2: #{tpu_custom_call.1} parent=1 // loop_pre_header
      _
    $region3: #{tpu_custom_call.1} parent=1 // loop_header
      %s19 = sphi 0, %s23
      %p20 = scmp.ge.s32.totalorder %s19, 4
      %s29 = sphi 0, %s31
      %s32 = sphi 0, %s29
      %s33 = sphi 0, %s32
      %s49 = sphi 0, %s33
      %s53 = sphi 0, %s53
      %s55 = sphi 0, %s53
      %s56 = sphi 0, %s55
      %s70 = sphi 0, %s56
      %s74 = sphi 0, %s74
      %s76 = sphi 0, %s74
      %s77 = sphi 0, %s76
      %s91 = sphi 0, %s77
      %s95 = sphi 0, %s95
      %s97 = sphi 0, %s95
      %s98 = sphi 0, %s97
      %s112 = sphi 0, %s98
      %s116 = sphi 0, %s116
      %s118 = sphi 0, %s116
      %s119 = sphi 0, %s118
      %s133 = sphi 0, %s119
      %s137 = sphi 0, %s137
      %s139 = sphi 0, %s137
      %s140 = sphi 0, %s139
      %s154 = sphi 0, %s140
      %s160 = sphi 0, %s162
      %s163 = sphi 0, %s160
      %s164 = sphi 0, %s163
      %s180 = sphi 0, %s164
    $region4: #{tpu_custom_call.1} parent=1 // loop_header_branch
      %22 = sbr.rel (%p20) target = $region8
    $region5: #{tpu_custom_call.1} parent=1 // loop_body
      %s24 = ssub.s32 %s19, 1
      %s25 = ssub.s32 %s19, 2
      %s26 = sadd.s32 %s19, 1
      %s27 = ssub.s32 %s19, %s26
      %p28 = scmp.eq.s32.totalorder %s27, 0
      %s30 = sadd.s32 %s29, 1
      %s31 = scalar_select %p28, %s29, %s30
      %p34 = pneg %p28
      %p35 = scmp.eq.s32.totalorder %s19, 1
      %p36 = por %p34, %p35
      %p37 = scmp.ne.s32.totalorder %s29, %s32
      %p38 = scmp.eq.s32.totalorder %s19, 0
      %p39 = por %p37, %p38
      %p40 = scmp.ne.s32.totalorder %s29, %s32
      %p41 = scmp.eq.s32.totalorder %s24, 1
      %p42 = por %p40, %p41
      %p43 = scmp.ne.s32.totalorder %s32, %s33
      %p44 = scmp.eq.s32.totalorder %s24, 0
      %p45 = por %p43, %p44
      %p46 = scmp.ne.s32.totalorder %s32, %s33
      %p47 = scmp.eq.s32.totalorder %s25, 1
      %p48 = por %p46, %p47
      %p50 = scmp.ne.s32.totalorder %s33, %s49
      %p51 = scmp.eq.s32.totalorder %s25, 0
      %p52 = por %p50, %p51
      %s54 = sadd.s32 %s53, 1
      %p57 = scmp.eq.s32.totalorder %s19, 1
      %p58 = scmp.ne.s32.totalorder %s53, %s55
      %p59 = scmp.eq.s32.totalorder %s19, 0
      %p60 = por %p58, %p59
      %p61 = scmp.ne.s32.totalorder %s53, %s55
      %p62 = scmp.eq.s32.totalorder %s24, 1
      %p63 = por %p61, %p62
      %p64 = scmp.ne.s32.totalorder %s55, %s56
      %p65 = scmp.eq.s32.totalorder %s24, 0
      %p66 = por %p64, %p65
      %p67 = scmp.ne.s32.totalorder %s55, %s56
      %p68 = scmp.eq.s32.totalorder %s25, 1
      %p69 = por %p67, %p68
      %p71 = scmp.ne.s32.totalorder %s56, %s70
      %p72 = scmp.eq.s32.totalorder %s25, 0
      %p73 = por %p71, %p72
      %s75 = sadd.s32 %s74, 1
      %p78 = scmp.eq.s32.totalorder %s19, 1
      %p79 = scmp.ne.s32.totalorder %s74, %s76
      %p80 = scmp.eq.s32.totalorder %s19, 0
      %p81 = por %p79, %p80
      %p82 = scmp.ne.s32.totalorder %s74, %s76
      %p83 = scmp.eq.s32.totalorder %s24, 1
      %p84 = por %p82, %p83
      %p85 = scmp.ne.s32.totalorder %s76, %s77
      %p86 = scmp.eq.s32.totalorder %s24, 0
      %p87 = por %p85, %p86
      %p88 = scmp.ne.s32.totalorder %s76, %s77
      %p89 = scmp.eq.s32.totalorder %s25, 1
      %p90 = por %p88, %p89
      %p92 = scmp.ne.s32.totalorder %s77, %s91
      %p93 = scmp.eq.s32.totalorder %s25, 0
      %p94 = por %p92, %p93
      %s96 = sadd.s32 %s95, 1
      %p99 = scmp.eq.s32.totalorder %s19, 1
      %p100 = scmp.ne.s32.totalorder %s95, %s97
      %p101 = scmp.eq.s32.totalorder %s19, 0
      %p102 = por %p100, %p101
      %p103 = scmp.ne.s32.totalorder %s95, %s97
      %p104 = scmp.eq.s32.totalorder %s24, 1
      %p105 = por %p103, %p104
      %p106 = scmp.ne.s32.totalorder %s97, %s98
      %p107 = scmp.eq.s32.totalorder %s24, 0
      %p108 = por %p106, %p107
      %p109 = scmp.ne.s32.totalorder %s97, %s98
      %p110 = scmp.eq.s32.totalorder %s25, 1
      %p111 = por %p109, %p110
      %p113 = scmp.ne.s32.totalorder %s98, %s112
      %p114 = scmp.eq.s32.totalorder %s25, 0
      %p115 = por %p113, %p114
      %s117 = sadd.s32 %s116, 1
      %p120 = scmp.eq.s32.totalorder %s19, 1
      %p121 = scmp.ne.s32.totalorder %s116, %s118
      %p122 = scmp.eq.s32.totalorder %s19, 0
      %p123 = por %p121, %p122
      %p124 = scmp.ne.s32.totalorder %s116, %s118
      %p125 = scmp.eq.s32.totalorder %s24, 1
      %p126 = por %p124, %p125
      %p127 = scmp.ne.s32.totalorder %s118, %s119
      %p128 = scmp.eq.s32.totalorder %s24, 0
      %p129 = por %p127, %p128
      %p130 = scmp.ne.s32.totalorder %s118, %s119
      %p131 = scmp.eq.s32.totalorder %s25, 1
      %p132 = por %p130, %p131
      %p134 = scmp.ne.s32.totalorder %s119, %s133
      %p135 = scmp.eq.s32.totalorder %s25, 0
      %p136 = por %p134, %p135
      %s138 = sadd.s32 %s137, 1
      %p141 = scmp.eq.s32.totalorder %s19, 1
      %p142 = scmp.ne.s32.totalorder %s137, %s139
      %p143 = scmp.eq.s32.totalorder %s19, 0
      %p144 = por %p142, %p143
      %p145 = scmp.ne.s32.totalorder %s137, %s139
      %p146 = scmp.eq.s32.totalorder %s24, 1
      %p147 = por %p145, %p146
      %p148 = scmp.ne.s32.totalorder %s139, %s140
      %p149 = scmp.eq.s32.totalorder %s24, 0
      %p150 = por %p148, %p149
      %p151 = scmp.ne.s32.totalorder %s139, %s140
      %p152 = scmp.eq.s32.totalorder %s25, 1
      %p153 = por %p151, %p152
      %p155 = scmp.ne.s32.totalorder %s140, %s154
      %p156 = scmp.eq.s32.totalorder %s25, 0
      %p157 = por %p155, %p156
      %s158 = ssub.s32 %s19, %s26
      %p159 = scmp.eq.s32.totalorder %s158, 0
      %s161 = sadd.s32 %s160, 1
      %s162 = scalar_select %p159, %s160, %s161
      %p165 = pneg %p159
      %p166 = scmp.eq.s32.totalorder %s19, 1
      %p167 = por %p165, %p166
      %p168 = scmp.ne.s32.totalorder %s160, %s163
      %p169 = scmp.eq.s32.totalorder %s19, 0
      %p170 = por %p168, %p169
      %p171 = scmp.ne.s32.totalorder %s160, %s163
      %p172 = scmp.eq.s32.totalorder %s24, 1
      %p173 = por %p171, %p172
      %p174 = scmp.ne.s32.totalorder %s163, %s164
      %p175 = scmp.eq.s32.totalorder %s24, 0
      %p176 = por %p174, %p175
      %p177 = scmp.ne.s32.totalorder %s163, %s164
      %p178 = scmp.eq.s32.totalorder %s25, 1
      %p179 = por %p177, %p178
      %p181 = scmp.ne.s32.totalorder %s164, %s180
      %p182 = scmp.eq.s32.totalorder %s25, 0
      %p183 = por %p181, %p182
      %p184 = scmp.le.s32.totalorder 1, %s19
      %p185 = scmp.lt.s32.totalorder %s19, 3
      %p186 = pnand %p184, %p185
      %p187 = pneg %p186
      // Predicated region
      $region9: #{tpu_custom_call.1} parent=5 // pred_check
        _
      $region10: #{tpu_custom_call.1} parent=5 // pred_check_branch
        %189 = sbr.rel (%p186) target = $region12
      $region11: #{tpu_custom_call.1} parent=5 // pred_region
        %s190 = ssub.s32 %s19, 1
        // Predicated region
        $region13: #{tpu_custom_call.1} parent=11 // pred_check
          %p191 = pneg %p66
        $region14: #{tpu_custom_call.1} parent=11 // pred_check_branch
          %193 = sbr.rel (%p191) target = $region16
        $region15: #{tpu_custom_call.1} parent=11 // pred_region
          _
        $region16: #{tpu_custom_call.1} parent=11 // pred_fallthru
          _
        // Predicated region
        $region17: #{tpu_custom_call.1} parent=11 // pred_check
          %p194 = pneg %p87
        $region18: #{tpu_custom_call.1} parent=11 // pred_check_branch
          %196 = sbr.rel (%p194) target = $region20
        $region19: #{tpu_custom_call.1} parent=11 // pred_region
          _
        $region20: #{tpu_custom_call.1} parent=11 // pred_fallthru
          _
        // Predicated region
        $region21: #{tpu_custom_call.1} parent=11 // pred_check
          %p197 = pneg %p108
        $region22: #{tpu_custom_call.1} parent=11 // pred_check_branch
          %199 = sbr.rel (%p197) target = $region24
        $region23: #{tpu_custom_call.1} parent=11 // pred_region
          %s201 = ssub.s32 512, 512
          %202 = vsyncadd [#allocation6], %s201
          %s203 = sshll.u32 [#allocation5], 4
          %s204 = int_to_ptr.vmem [resolvable:$true] %s203
          %209 = dma.hbm_to_vmem [thread:$0]  %s3, 512, %s204, [#allocation6], 128, 128, 8
        $region24: #{tpu_custom_call.1} parent=11 // pred_fallthru
          _
        // Predicated region
        $region25: #{tpu_custom_call.1} parent=11 // pred_check
          %p210 = pneg %p129
        $region26: #{tpu_custom_call.1} parent=11 // pred_check_branch
          %212 = sbr.rel (%p210) target = $region28
        $region27: #{tpu_custom_call.1} parent=11 // pred_region
          %s214 = ssub.s32 512, 512
          %215 = vsyncadd [#allocation6], %s214
          %s216 = sshll.u32 [#allocation7], 4
          %s217 = int_to_ptr.vmem [resolvable:$true] %s216
          %222 = dma.hbm_to_vmem [thread:$0]  %s4, 512, %s217, [#allocation6], 128, 128, 8
        $region28: #{tpu_custom_call.1} parent=11 // pred_fallthru
          _
        // Predicated region
        $region29: #{tpu_custom_call.1} parent=11 // pred_check
          %p223 = pneg %p150
        $region30: #{tpu_custom_call.1} parent=11 // pred_check_branch
          %225 = sbr.rel (%p223) target = $region32
        $region31: #{tpu_custom_call.1} parent=11 // pred_region
          _
        $region32: #{tpu_custom_call.1} parent=11 // pred_fallthru
          _
      $region12: #{tpu_custom_call.1} parent=5 // pred_fallthru
        _
      %p226 = scmp.lt.s32.totalorder %s19, 2
      // Predicated region
      $region33: #{tpu_custom_call.1} parent=5 // pred_check
        %p227 = pneg %p226
      $region34: #{tpu_custom_call.1} parent=5 // pred_check_branch
        %229 = sbr.rel (%p227) target = $region36
      $region35: #{tpu_custom_call.1} parent=5 // pred_region
        // Predicated region
        $region37: #{tpu_custom_call.1} parent=35 // pred_check
          %p230 = pneg %p39
        $region38: #{tpu_custom_call.1} parent=35 // pred_check_branch
          %232 = sbr.rel (%p230) target = $region40
        $region39: #{tpu_custom_call.1} parent=35 // pred_region
          %s233 = sand.u32 %s29, 1
          %s234 = scalar_lea.sflag [#allocation3], %s233
          %s235 = sand.u32 %s29, 1
          %s236 = smul.addr %s235, 8
          %s237 = scalar_lea.vmem [#allocation2], %s236
          %s239 = ssub.s32 128, 128
          %240 = vsyncadd %s234, %s239
          %s241 = smul.addr %s19, 128
          %s242 = scalar_lea.hbm %s0, %s241
          %s244 = sshll.u32 %s237, 4
          %s245 = int_to_ptr.vmem [resolvable:$true] %s244
          %247 = dma.hbm_to_vmem [thread:$0]  %s242, 128, %s245, %s234
        $region40: #{tpu_custom_call.1} parent=35 // pred_fallthru
          _
      $region36: #{tpu_custom_call.1} parent=5 // pred_fallthru
        _
      %p248 = scmp.le.s32.totalorder 1, %s19
      %p249 = scmp.lt.s32.totalorder %s19, 3
      %p250 = pnand %p248, %p249
      %p251 = pneg %p250
      // Predicated region
      $region41: #{tpu_custom_call.1} parent=5 // pred_check
        _
      $region42: #{tpu_custom_call.1} parent=5 // pred_check_branch
        %253 = sbr.rel (%p250) target = $region44
      $region43: #{tpu_custom_call.1} parent=5 // pred_region
        %s254 = ssub.s32 %s19, 1
        %s255 = sand.u32 %s32, 1
        %s256 = scalar_lea.sflag [#allocation3], %s255
        %s257 = sand.u32 %s32, 1
        %s258 = smul.addr %s257, 8
        %s259 = scalar_lea.vmem [#allocation2], %s258
        // Predicated region
        $region45: #{tpu_custom_call.1} parent=43 // pred_check
          %p260 = pneg %p45
        $region46: #{tpu_custom_call.1} parent=43 // pred_check_branch
          %262 = sbr.rel (%p260) target = $region48
        $region47: #{tpu_custom_call.1} parent=43 // pred_region
          %263 = dma.done %s256, 128
        $region48: #{tpu_custom_call.1} parent=43 // pred_fallthru
          _
        // Predicated region
        $region49: #{tpu_custom_call.1} parent=43 // pred_check
          %p264 = pneg %p108
        $region50: #{tpu_custom_call.1} parent=43 // pred_check_branch
          %266 = sbr.rel (%p264) target = $region52
        $region51: #{tpu_custom_call.1} parent=43 // pred_region
          %267 = dma.done [#allocation6], 512
        $region52: #{tpu_custom_call.1} parent=43 // pred_fallthru
          _
        // Predicated region
        $region53: #{tpu_custom_call.1} parent=43 // pred_check
          %p268 = pneg %p129
        $region54: #{tpu_custom_call.1} parent=43 // pred_check_branch
          %270 = sbr.rel (%p268) target = $region56
        $region55: #{tpu_custom_call.1} parent=43 // pred_region
          %271 = dma.done [#allocation6], 512
        $region56: #{tpu_custom_call.1} parent=43 // pred_fallthru
          _
        %s272 = sand.u32 %s32, 1
        %s273 = scalar_lea.sflag [#allocation3], %s272
        %s274 = sand.u32 %s32, 1
        %s275 = smul.addr %s274, 8
        %s276 = scalar_lea.vmem [#allocation2], %s275
        %p277 = pneg %p45
        %p278 = pneg %p42
        %p279 = pneg %p66
        %p280 = pneg %p63
        %p281 = pneg %p87
        %p282 = pneg %p84
        %p283 = pneg %p108
        %p284 = pneg %p105
        %p285 = pneg %p129
        %p286 = pneg %p126
        %p287 = pneg %p150
        %p288 = pneg %p147
        %p289 = pneg %p176
        %p290 = pneg %p173
        %s291 = sand.u32 %s163, 1
        %s292 = scalar_lea.sflag [#allocation4], %s291
        %s293 = sand.u32 %s163, 1
        %s294 = smul.addr %s293, 8
        %s295 = scalar_lea.vmem [#allocation8], %s294
        %v296 = vld [vmem:[%s259] sm:$0xff]
        %vm297 = vcmask 261120
        %v298 = vsel %vm297, %v296, 0.0
        %299 = vadd.xlane.f32.xlu0 %v298
        %v300 = vpop.xlane.xlu0 %299
        %v301 = vrcp.pop 32.0
        %v302 = vmul.f32 %v300, %v301
        %v303 = vsub.f32 %v296, %v302
        %v304 = vmul.f32 %v303, %v303
        %v305 = vsel %vm297, %v304, 0.0
        %306 = vadd.xlane.f32.xlu0 %v305
        %v307 = vpop.xlane.xlu0 %306
        %v308 = vmul.f32 %v307, %v301
        %v309 = vadd.f32 %v308, 1e-05
        %v310 = vrsqrt.pop %v309
        %v311 = vmul.f32 %v303, %v310
        %v312 = vld [vmem:[%s1] sm:$0x1]
        %v314 = vlaneseq
        %v315 = vshrl.u32 %v314, 7
        %v316 = vsub.s32 0, %v315
        %v317 = vrot.slane %v312, %v316
        %v319 = vmul.f32 %v311, %v317
        %v320 = vld [vmem:[%s2] sm:$0x1]
        %v322 = vlaneseq
        %v323 = vshrl.u32 %v322, 7
        %v324 = vsub.s32 0, %v323
        %v325 = vrot.slane %v320, %v324
        %v327 = vadd.f32 %v319, %v325
        %v328 = vld [vmem:[#allocation5] sm:$0xff]
        %v329 = vld [vmem:[#allocation5 + $0x8] sm:$0xff]
        %v330 = vld [vmem:[#allocation5 + $0x10] sm:$0xff]
        %v331 = vld [vmem:[#allocation5 + $0x18] sm:$0xff]
        %v333 = vsel %vm297, %v327, 0
        %335 = vmatprep.subr.mxu0 0.0
        %336 = vmatpush1.msra.mxu0 0.0
        %337 = vmatprep.subr.mxu0 0.0
        %338 = vmatpush1.msra.mxu0 0.0
        %339 = vmatprep.subr.mxu0 0.0
        %340 = vmatpush1.msra.mxu0 0.0
        %341 = vmatprep.subr.mxu0 0.0
        %342 = vmatpush1.msra.mxu0 0.0
        %343 = vmatprep.subr.mxu0 0.0
        %344 = vmatpush1.msra.mxu0 0.0
        %345 = vmatprep.subr.mxu0 0.0
        %346 = vmatpush1.msra.mxu0 0.0
        %347 = vmatprep.subr.mxu0 0.0
        %348 = vmatpush1.msra.mxu0 0.0
        %349 = vmatprep.subr.mxu0 0.0
        %350 = vmatpush1.msra.mxu0 0.0
        %351 = vmatprep.subr.mxu0 0.0
        %352 = vmatpush1.msra.mxu0 0.0
        %353 = vmatprep.subr.mxu0 0.0
        %354 = vmatpush1.msra.mxu0 0.0
        %355 = vmatprep.subr.mxu0 0.0
        %356 = vmatpush1.msra.mxu0 0.0
        %357 = vmatprep.subr.mxu0 0.0
        %358 = vmatpush1.msra.mxu0 0.0
        %359 = vmatprep.subr.mxu0 0.0
        %360 = vmatpush1.msra.mxu0 %v331
        %361 = vmatprep.subr.mxu0 0.0
        %362 = vmatpush1.msra.mxu0 %v330
        %363 = vmatprep.subr.mxu0 0.0
        %364 = vmatpush1.msra.mxu0 %v329
        %365 = vmatprep.subr.mxu0 0.0
        %366 = vmatpush1.msra.mxu0 %v328
        %367 = vmatprep.subr.mxu0 0.0
        %368 = vmatpush2.msra.mxu0 0.0
        %369 = vmatprep.subr.mxu0 0.0
        %370 = vmatpush2.msra.mxu0 0.0
        %371 = vmatprep.subr.mxu0 0.0
        %372 = vmatpush2.msra.mxu0 0.0
        %373 = vmatprep.subr.mxu0 0.0
        %374 = vmatpush2.msra.mxu0 0.0
        %375 = vmatprep.subr.mxu0 0.0
        %376 = vmatpush2.msra.mxu0 0.0
        %377 = vmatprep.subr.mxu0 0.0
        %378 = vmatpush2.msra.mxu0 0.0
        %379 = vmatprep.subr.mxu0 0.0
        %380 = vmatpush2.msra.mxu0 0.0
        %381 = vmatprep.subr.mxu0 0.0
        %382 = vmatpush2.msra.mxu0 0.0
        %383 = vmatprep.subr.mxu0 0.0
        %384 = vmatpush2.msra.mxu0 0.0
        %385 = vmatprep.subr.mxu0 0.0
        %386 = vmatpush2.msra.mxu0 0.0
        %387 = vmatprep.subr.mxu0 0.0
        %388 = vmatpush2.msra.mxu0 0.0
        %389 = vmatprep.subr.mxu0 0.0
        %390 = vmatpush2.msra.mxu0 0.0
        %391 = vmatprep.subr.mxu0 0.0
        %392 = vmatpush2.msra.mxu0 0.0
        %393 = vmatprep.subr.mxu0 0.0
        %394 = vmatpush2.msra.mxu0 0.0
        %395 = vmatprep.subr.mxu0 0.0
        %396 = vmatpush2.msra.mxu0 0.0
        %397 = vmatprep.subr.mxu0 0.0
        %398 = vmatpush2.msra.mxu0 0.0
        %399 = vmatprep.mubr.f32.mxu0 0.0
        %400 = vmatmul.mubr.f32.gmra.mxu0 %v333
        %v401 = vpop.f32.mrf.mxu0
        %v402 = vadd.f32 0.0, %v401
        %v403 = vpop.f32.mrf.mxu0
        %404 = vdwg.mxu0
        %406 = vrot.lane.b32.xlu0 %v402, 96
        %v407 = vpop.permute.xlu0 %406
        %vm408 = vcmask 130048
        %v409 = vsel %vm408, %v402, 0
        %v411 = vsel %vm408, %v407, 0
        %413 = vmatprep.subr.mxu0 0.0
        %414 = vmatpush1.xpose.msra.mxu0 0.0
        %415 = vmatprep.subr.mxu0 0.0
        %416 = vmatpush1.xpose.msra.mxu0 0.0
        %417 = vmatprep.subr.mxu0 0.0
        %418 = vmatpush1.xpose.msra.mxu0 0.0
        %419 = vmatprep.subr.mxu0 0.0
        %420 = vmatpush1.xpose.msra.mxu0 0.0
        %421 = vmatprep.subr.mxu0 0.0
        %422 = vmatpush1.xpose.msra.mxu0 0.0
        %423 = vmatprep.subr.mxu0 0.0
        %424 = vmatpush1.xpose.msra.mxu0 0.0
        %425 = vmatprep.subr.mxu0 0.0
        %426 = vmatpush1.xpose.msra.mxu0 0.0
        %427 = vmatprep.subr.mxu0 0.0
        %428 = vmatpush1.xpose.msra.mxu0 0.0
        %429 = vmatprep.subr.mxu0 0.0
        %430 = vmatpush1.xpose.msra.mxu0 0.0
        %431 = vmatprep.subr.mxu0 0.0
        %432 = vmatpush1.xpose.msra.mxu0 0.0
        %433 = vmatprep.subr.mxu0 0.0
        %434 = vmatpush1.xpose.msra.mxu0 0.0
        %435 = vmatprep.subr.mxu0 0.0
        %436 = vmatpush1.xpose.msra.mxu0 0.0
        %437 = vmatprep.subr.mxu0 0.0
        %438 = vmatpush1.xpose.msra.mxu0 0.0
        %439 = vmatprep.subr.mxu0 0.0
        %440 = vmatpush1.xpose.msra.mxu0 0.0
        %441 = vmatprep.subr.mxu0 0.0
        %442 = vmatpush1.xpose.msra.mxu0 0.0
        %443 = vmatprep.subr.mxu0 0.0
        %444 = vmatpush1.xpose.msra.mxu0 %v411
        %445 = vmatprep.subr.mxu0 0.0
        %446 = vmatpush2.xpose.msra.mxu0 0.0
        %447 = vmatprep.subr.mxu0 0.0
        %448 = vmatpush2.xpose.msra.mxu0 0.0
        %449 = vmatprep.subr.mxu0 0.0
        %450 = vmatpush2.xpose.msra.mxu0 0.0
        %451 = vmatprep.subr.mxu0 0.0
        %452 = vmatpush2.xpose.msra.mxu0 0.0
        %453 = vmatprep.subr.mxu0 0.0
        %454 = vmatpush2.xpose.msra.mxu0 0.0
        %455 = vmatprep.subr.mxu0 0.0
        %456 = vmatpush2.xpose.msra.mxu0 0.0
        %457 = vmatprep.subr.mxu0 0.0
        %458 = vmatpush2.xpose.msra.mxu0 0.0
        %459 = vmatprep.subr.mxu0 0.0
        %460 = vmatpush2.xpose.msra.mxu0 0.0
        %461 = vmatprep.subr.mxu0 0.0
        %462 = vmatpush2.xpose.msra.mxu0 0.0
        %463 = vmatprep.subr.mxu0 0.0
        %464 = vmatpush2.xpose.msra.mxu0 0.0
        %465 = vmatprep.subr.mxu0 0.0
        %466 = vmatpush2.xpose.msra.mxu0 0.0
        %467 = vmatprep.subr.mxu0 0.0
        %468 = vmatpush2.xpose.msra.mxu0 0.0
        %469 = vmatprep.subr.mxu0 0.0
        %470 = vmatpush2.xpose.msra.mxu0 0.0
        %471 = vmatprep.subr.mxu0 0.0
        %472 = vmatpush2.xpose.msra.mxu0 0.0
        %473 = vmatprep.subr.mxu0 0.0
        %474 = vmatpush2.xpose.msra.mxu0 0.0
        %475 = vmatprep.subr.mxu0 0.0
        %476 = vmatpush2.xpose.msra.mxu0 0.0
        %477 = vmatprep.mubr.f32.mxu0 0.0
        %478 = vmatmul.mubr.f32.gmra.mxu0 %v409
        %v479 = vpop.f32.mrf.mxu0
        %v480 = vadd.f32 0.0, %v479
        %v481 = vpop.f32.mrf.mxu0
        %482 = vdwg.mxu0
        %vm483 = vcmask 64512
        %v484 = vsel %vm483, %v480, -inf
        %485 = vmax.xlane.f32.xlu0 %v484
        %v486 = vpop.xlane.xlu0 %485
        %v487 = vsub.f32 %v480, %v486
        %v488 = vmul.f32 %v487, 1.442695
        %v489 = vpow.pop %v488
        %v490 = vsel %vm483, %v489, 0.0
        %491 = vadd.xlane.f32.xlu0 %v490
        %v492 = vpop.xlane.xlu0 %491
        %493 = vrot.lane.b32.xlu0 %v402, 64
        %v494 = vpop.permute.xlu0 %493
        %v497 = vsel %vm483, %v489, 0
        %499 = vmatprep.subr.mxu0 0.0
        %500 = vmatpush1.msra.mxu0 0.0
        %501 = vmatprep.subr.mxu0 0.0
        %502 = vmatpush1.msra.mxu0 0.0
        %503 = vmatprep.subr.mxu0 0.0
        %504 = vmatpush1.msra.mxu0 0.0
        %505 = vmatprep.subr.mxu0 0.0
        %506 = vmatpush1.msra.mxu0 0.0
        %507 = vmatprep.subr.mxu0 0.0
        %508 = vmatpush1.msra.mxu0 0.0
        %509 = vmatprep.subr.mxu0 0.0
        %510 = vmatpush1.msra.mxu0 0.0
        %511 = vmatprep.subr.mxu0 0.0
        %512 = vmatpush1.msra.mxu0 0.0
        %513 = vmatprep.subr.mxu0 0.0
        %514 = vmatpush1.msra.mxu0 0.0
        %515 = vmatprep.subr.mxu0 0.0
        %516 = vmatpush1.msra.mxu0 0.0
        %517 = vmatprep.subr.mxu0 0.0
        %518 = vmatpush1.msra.mxu0 0.0
        %519 = vmatprep.subr.mxu0 0.0
        %520 = vmatpush1.msra.mxu0 0.0
        %521 = vmatprep.subr.mxu0 0.0
        %522 = vmatpush1.msra.mxu0 0.0
        %523 = vmatprep.subr.mxu0 0.0
        %524 = vmatpush1.msra.mxu0 0.0
        %525 = vmatprep.subr.mxu0 0.0
        %526 = vmatpush1.msra.mxu0 0.0
        %527 = vmatprep.subr.mxu0 0.0
        %528 = vmatpush1.msra.mxu0 0.0
        %529 = vmatprep.subr.mxu0 0.0
        %530 = vmatpush1.msra.mxu0 %v494
        %531 = vmatprep.subr.mxu0 0.0
        %532 = vmatpush2.msra.mxu0 0.0
        %533 = vmatprep.subr.mxu0 0.0
        %534 = vmatpush2.msra.mxu0 0.0
        %535 = vmatprep.subr.mxu0 0.0
        %536 = vmatpush2.msra.mxu0 0.0
        %537 = vmatprep.subr.mxu0 0.0
        %538 = vmatpush2.msra.mxu0 0.0
        %539 = vmatprep.subr.mxu0 0.0
        %540 = vmatpush2.msra.mxu0 0.0
        %541 = vmatprep.subr.mxu0 0.0
        %542 = vmatpush2.msra.mxu0 0.0
        %543 = vmatprep.subr.mxu0 0.0
        %544 = vmatpush2.msra.mxu0 0.0
        %545 = vmatprep.subr.mxu0 0.0
        %546 = vmatpush2.msra.mxu0 0.0
        %547 = vmatprep.subr.mxu0 0.0
        %548 = vmatpush2.msra.mxu0 0.0
        %549 = vmatprep.subr.mxu0 0.0
        %550 = vmatpush2.msra.mxu0 0.0
        %551 = vmatprep.subr.mxu0 0.0
        %552 = vmatpush2.msra.mxu0 0.0
        %553 = vmatprep.subr.mxu0 0.0
        %554 = vmatpush2.msra.mxu0 0.0
        %555 = vmatprep.subr.mxu0 0.0
        %556 = vmatpush2.msra.mxu0 0.0
        %557 = vmatprep.subr.mxu0 0.0
        %558 = vmatpush2.msra.mxu0 0.0
        %559 = vmatprep.subr.mxu0 0.0
        %560 = vmatpush2.msra.mxu0 0.0
        %561 = vmatprep.subr.mxu0 0.0
        %562 = vmatpush2.msra.mxu0 0.0
        %563 = vmatprep.mubr.f32.mxu0 0.0
        %564 = vmatmul.mubr.f32.gmra.mxu0 %v497
        %v565 = vpop.f32.mrf.mxu0
        %v566 = vadd.f32 0.0, %v565
        %v567 = vpop.f32.mrf.mxu0
        %568 = vdwg.mxu0
        %v569 = vrcp.pop %v492
        %v570 = vmul.f32 %v566, %v569
        %571 = vrot.lane.b32.xlu0 %v402, 112
        %v572 = vpop.permute.xlu0 %571
        %573 = vrot.lane.b32.xlu0 %v402, 80
        %v574 = vpop.permute.xlu0 %573
        %v575 = vsel %vm408, %v572, 0
        %v577 = vsel %vm408, %v574, 0
        %579 = vmatprep.subr.mxu0 0.0
        %580 = vmatpush1.xpose.msra.mxu0 0.0
        %581 = vmatprep.subr.mxu0 0.0
        %582 = vmatpush1.xpose.msra.mxu0 0.0
        %583 = vmatprep.subr.mxu0 0.0
        %584 = vmatpush1.xpose.msra.mxu0 0.0
        %585 = vmatprep.subr.mxu0 0.0
        %586 = vmatpush1.xpose.msra.mxu0 0.0
        %587 = vmatprep.subr.mxu0 0.0
        %588 = vmatpush1.xpose.msra.mxu0 0.0
        %589 = vmatprep.subr.mxu0 0.0
        %590 = vmatpush1.xpose.msra.mxu0 0.0
        %591 = vmatprep.subr.mxu0 0.0
        %592 = vmatpush1.xpose.msra.mxu0 0.0
        %593 = vmatprep.subr.mxu0 0.0
        %594 = vmatpush1.xpose.msra.mxu0 0.0
        %595 = vmatprep.subr.mxu0 0.0
        %596 = vmatpush1.xpose.msra.mxu0 0.0
        %597 = vmatprep.subr.mxu0 0.0
        %598 = vmatpush1.xpose.msra.mxu0 0.0
        %599 = vmatprep.subr.mxu0 0.0
        %600 = vmatpush1.xpose.msra.mxu0 0.0
        %601 = vmatprep.subr.mxu0 0.0
        %602 = vmatpush1.xpose.msra.mxu0 0.0
        %603 = vmatprep.subr.mxu0 0.0
        %604 = vmatpush1.xpose.msra.mxu0 0.0
        %605 = vmatprep.subr.mxu0 0.0
        %606 = vmatpush1.xpose.msra.mxu0 0.0
        %607 = vmatprep.subr.mxu0 0.0
        %608 = vmatpush1.xpose.msra.mxu0 0.0
        %609 = vmatprep.subr.mxu0 0.0
        %610 = vmatpush1.xpose.msra.mxu0 %v577
        %611 = vmatprep.subr.mxu0 0.0
        %612 = vmatpush2.xpose.msra.mxu0 0.0
        %613 = vmatprep.subr.mxu0 0.0
        %614 = vmatpush2.xpose.msra.mxu0 0.0
        %615 = vmatprep.subr.mxu0 0.0
        %616 = vmatpush2.xpose.msra.mxu0 0.0
        %617 = vmatprep.subr.mxu0 0.0
        %618 = vmatpush2.xpose.msra.mxu0 0.0
        %619 = vmatprep.subr.mxu0 0.0
        %620 = vmatpush2.xpose.msra.mxu0 0.0
        %621 = vmatprep.subr.mxu0 0.0
        %622 = vmatpush2.xpose.msra.mxu0 0.0
        %623 = vmatprep.subr.mxu0 0.0
        %624 = vmatpush2.xpose.msra.mxu0 0.0
        %625 = vmatprep.subr.mxu0 0.0
        %626 = vmatpush2.xpose.msra.mxu0 0.0
        %627 = vmatprep.subr.mxu0 0.0
        %628 = vmatpush2.xpose.msra.mxu0 0.0
        %629 = vmatprep.subr.mxu0 0.0
        %630 = vmatpush2.xpose.msra.mxu0 0.0
        %631 = vmatprep.subr.mxu0 0.0
        %632 = vmatpush2.xpose.msra.mxu0 0.0
        %633 = vmatprep.subr.mxu0 0.0
        %634 = vmatpush2.xpose.msra.mxu0 0.0
        %635 = vmatprep.subr.mxu0 0.0
        %636 = vmatpush2.xpose.msra.mxu0 0.0
        %637 = vmatprep.subr.mxu0 0.0
        %638 = vmatpush2.xpose.msra.mxu0 0.0
        %639 = vmatprep.subr.mxu0 0.0
        %640 = vmatpush2.xpose.msra.mxu0 0.0
        %641 = vmatprep.subr.mxu0 0.0
        %642 = vmatpush2.xpose.msra.mxu0 0.0
        %643 = vmatprep.mubr.f32.mxu0 0.0
        %644 = vmatmul.mubr.f32.gmra.mxu0 %v575
        %v645 = vpop.f32.mrf.mxu0
        %v646 = vadd.f32 0.0, %v645
        %v647 = vpop.f32.mrf.mxu0
        %648 = vdwg.mxu0
        %v649 = vsel %vm483, %v646, -inf
        %650 = vmax.xlane.f32.xlu0 %v649
        %v651 = vpop.xlane.xlu0 %650
        %v652 = vsub.f32 %v646, %v651
        %v653 = vmul.f32 %v652, 1.442695
        %v654 = vpow.pop %v653
        %v655 = vsel %vm483, %v654, 0.0
        %656 = vadd.xlane.f32.xlu0 %v655
        %v657 = vpop.xlane.xlu0 %656
        %658 = vrot.lane.b32.xlu0 %v402, 48
        %v659 = vpop.permute.xlu0 %658
        %v662 = vsel %vm483, %v654, 0
        %664 = vmatprep.subr.mxu0 0.0
        %665 = vmatpush1.msra.mxu0 0.0
        %666 = vmatprep.subr.mxu0 0.0
        %667 = vmatpush1.msra.mxu0 0.0
        %668 = vmatprep.subr.mxu0 0.0
        %669 = vmatpush1.msra.mxu0 0.0
        %670 = vmatprep.subr.mxu0 0.0
        %671 = vmatpush1.msra.mxu0 0.0
        %672 = vmatprep.subr.mxu0 0.0
        %673 = vmatpush1.msra.mxu0 0.0
        %674 = vmatprep.subr.mxu0 0.0
        %675 = vmatpush1.msra.mxu0 0.0
        %676 = vmatprep.subr.mxu0 0.0
        %677 = vmatpush1.msra.mxu0 0.0
        %678 = vmatprep.subr.mxu0 0.0
        %679 = vmatpush1.msra.mxu0 0.0
        %680 = vmatprep.subr.mxu0 0.0
        %681 = vmatpush1.msra.mxu0 0.0
        %682 = vmatprep.subr.mxu0 0.0
        %683 = vmatpush1.msra.mxu0 0.0
        %684 = vmatprep.subr.mxu0 0.0
        %685 = vmatpush1.msra.mxu0 0.0
        %686 = vmatprep.subr.mxu0 0.0
        %687 = vmatpush1.msra.mxu0 0.0
        %688 = vmatprep.subr.mxu0 0.0
        %689 = vmatpush1.msra.mxu0 0.0
        %690 = vmatprep.subr.mxu0 0.0
        %691 = vmatpush1.msra.mxu0 0.0
        %692 = vmatprep.subr.mxu0 0.0
        %693 = vmatpush1.msra.mxu0 0.0
        %694 = vmatprep.subr.mxu0 0.0
        %695 = vmatpush1.msra.mxu0 %v659
        %696 = vmatprep.subr.mxu0 0.0
        %697 = vmatpush2.msra.mxu0 0.0
        %698 = vmatprep.subr.mxu0 0.0
        %699 = vmatpush2.msra.mxu0 0.0
        %700 = vmatprep.subr.mxu0 0.0
        %701 = vmatpush2.msra.mxu0 0.0
        %702 = vmatprep.subr.mxu0 0.0
        %703 = vmatpush2.msra.mxu0 0.0
        %704 = vmatprep.subr.mxu0 0.0
        %705 = vmatpush2.msra.mxu0 0.0
        %706 = vmatprep.subr.mxu0 0.0
        %707 = vmatpush2.msra.mxu0 0.0
        %708 = vmatprep.subr.mxu0 0.0
        %709 = vmatpush2.msra.mxu0 0.0
        %710 = vmatprep.subr.mxu0 0.0
        %711 = vmatpush2.msra.mxu0 0.0
        %712 = vmatprep.subr.mxu0 0.0
        %713 = vmatpush2.msra.mxu0 0.0
        %714 = vmatprep.subr.mxu0 0.0
        %715 = vmatpush2.msra.mxu0 0.0
        %716 = vmatprep.subr.mxu0 0.0
        %717 = vmatpush2.msra.mxu0 0.0
        %718 = vmatprep.subr.mxu0 0.0
        %719 = vmatpush2.msra.mxu0 0.0
        %720 = vmatprep.subr.mxu0 0.0
        %721 = vmatpush2.msra.mxu0 0.0
        %722 = vmatprep.subr.mxu0 0.0
        %723 = vmatpush2.msra.mxu0 0.0
        %724 = vmatprep.subr.mxu0 0.0
        %725 = vmatpush2.msra.mxu0 0.0
        %726 = vmatprep.subr.mxu0 0.0
        %727 = vmatpush2.msra.mxu0 0.0
        %728 = vmatprep.mubr.f32.mxu0 0.0
        %729 = vmatmul.mubr.f32.gmra.mxu0 %v662
        %v730 = vpop.f32.mrf.mxu0
        %v731 = vadd.f32 0.0, %v730
        %v732 = vpop.f32.mrf.mxu0
        %733 = vdwg.mxu0
        %v734 = vrcp.pop %v657
        %v735 = vmul.f32 %v731, %v734
        %737 = vrot.lane.b32.xlu0 %v735, 16
        %v738 = vpop.permute.xlu0 %737
        %v740 = vsel %vm408, %v570, %v738
        %v741 = vld [vmem:[#allocation7] sm:$0xff]
        %v742 = vld [vmem:[#allocation7 + $0x8] sm:$0xff]
        %v743 = vld [vmem:[#allocation7 + $0x10] sm:$0xff]
        %v744 = vld [vmem:[#allocation7 + $0x18] sm:$0xff]
        %v745 = vld [vmem:[%s5] sm:$0x1]
        %v747 = vlaneseq
        %v748 = vshrl.u32 %v747, 7
        %v749 = vsub.s32 0, %v748
        %v750 = vrot.slane %v745, %v749
        %v753 = vsel %vm297, %v740, 0
        %755 = vmatprep.subr.mxu0 0.0
        %756 = vmatpush1.msra.mxu0 0.0
        %757 = vmatprep.subr.mxu0 0.0
        %758 = vmatpush1.msra.mxu0 0.0
        %759 = vmatprep.subr.mxu0 0.0
        %760 = vmatpush1.msra.mxu0 0.0
        %761 = vmatprep.subr.mxu0 0.0
        %762 = vmatpush1.msra.mxu0 0.0
        %763 = vmatprep.subr.mxu0 0.0
        %764 = vmatpush1.msra.mxu0 0.0
        %765 = vmatprep.subr.mxu0 0.0
        %766 = vmatpush1.msra.mxu0 0.0
        %767 = vmatprep.subr.mxu0 0.0
        %768 = vmatpush1.msra.mxu0 0.0
        %769 = vmatprep.subr.mxu0 0.0
        %770 = vmatpush1.msra.mxu0 0.0
        %771 = vmatprep.subr.mxu0 0.0
        %772 = vmatpush1.msra.mxu0 0.0
        %773 = vmatprep.subr.mxu0 0.0
        %774 = vmatpush1.msra.mxu0 0.0
        %775 = vmatprep.subr.mxu0 0.0
        %776 = vmatpush1.msra.mxu0 0.0
        %777 = vmatprep.subr.mxu0 0.0
        %778 = vmatpush1.msra.mxu0 0.0
        %779 = vmatprep.subr.mxu0 0.0
        %780 = vmatpush1.msra.mxu0 %v744
        %781 = vmatprep.subr.mxu0 0.0
        %782 = vmatpush1.msra.mxu0 %v743
        %783 = vmatprep.subr.mxu0 0.0
        %784 = vmatpush1.msra.mxu0 %v742
        %785 = vmatprep.subr.mxu0 0.0
        %786 = vmatpush1.msra.mxu0 %v741
        %787 = vmatprep.subr.mxu0 0.0
        %788 = vmatpush2.msra.mxu0 0.0
        %789 = vmatprep.subr.mxu0 0.0
        %790 = vmatpush2.msra.mxu0 0.0
        %791 = vmatprep.subr.mxu0 0.0
        %792 = vmatpush2.msra.mxu0 0.0
        %793 = vmatprep.subr.mxu0 0.0
        %794 = vmatpush2.msra.mxu0 0.0
        %795 = vmatprep.subr.mxu0 0.0
        %796 = vmatpush2.msra.mxu0 0.0
        %797 = vmatprep.subr.mxu0 0.0
        %798 = vmatpush2.msra.mxu0 0.0
        %799 = vmatprep.subr.mxu0 0.0
        %800 = vmatpush2.msra.mxu0 0.0
        %801 = vmatprep.subr.mxu0 0.0
        %802 = vmatpush2.msra.mxu0 0.0
        %803 = vmatprep.subr.mxu0 0.0
        %804 = vmatpush2.msra.mxu0 0.0
        %805 = vmatprep.subr.mxu0 0.0
        %806 = vmatpush2.msra.mxu0 0.0
        %807 = vmatprep.subr.mxu0 0.0
        %808 = vmatpush2.msra.mxu0 0.0
        %809 = vmatprep.subr.mxu0 0.0
        %810 = vmatpush2.msra.mxu0 0.0
        %811 = vmatprep.subr.mxu0 0.0
        %812 = vmatpush2.msra.mxu0 0.0
        %813 = vmatprep.subr.mxu0 0.0
        %814 = vmatpush2.msra.mxu0 0.0
        %815 = vmatprep.subr.mxu0 0.0
        %816 = vmatpush2.msra.mxu0 0.0
        %817 = vmatprep.subr.mxu0 0.0
        %818 = vmatpush2.msra.mxu0 0.0
        %819 = vmatprep.mubr.f32.mxu0 0.0
        %820 = vmatmul.mubr.f32.gmra.mxu0 %v753
        %v821 = vpop.f32.mrf.mxu0
        %v822 = vadd.f32 %v750, %v821
        %v823 = vpop.f32.mrf.mxu0
        %824 = vdwg.mxu0
        %825 = vst.msk [vmem:[%s295] sm:$0xff] %vm297, %v822
        %s826 = sand.u32 %s163, 1
        %s827 = scalar_lea.sflag [#allocation4], %s826
        %s828 = sand.u32 %s163, 1
        %s829 = smul.addr %s828, 8
        %s830 = scalar_lea.vmem [#allocation8], %s829
        // Predicated region
        $region57: #{tpu_custom_call.1} parent=43 // pred_check
          %p831 = pneg %p173
        $region58: #{tpu_custom_call.1} parent=43 // pred_check_branch
          %833 = sbr.rel (%p831) target = $region60
        $region59: #{tpu_custom_call.1} parent=43 // pred_region
          %s835 = ssub.s32 128, 128
          %836 = vsyncadd %s827, %s835
          %s837 = smul.addr %s24, 128
          %s838 = scalar_lea.hbm %s6, %s837
          %s840 = sshll.u32 %s830, 4
          %s841 = int_to_ptr.vmem [resolvable:$true] %s840
          %843 = dma.vmem_to_hbm [thread:$0]  %s841, 128, %s838, %s827
        $region60: #{tpu_custom_call.1} parent=43 // pred_fallthru
          _
      $region44: #{tpu_custom_call.1} parent=5 // pred_fallthru
        _
      %p844 = scmp.le.s32.totalorder 2, %s19
      // Predicated region
      $region61: #{tpu_custom_call.1} parent=5 // pred_check
        %p845 = pneg %p844
      $region62: #{tpu_custom_call.1} parent=5 // pred_check_branch
        %847 = sbr.rel (%p845) target = $region64
      $region63: #{tpu_custom_call.1} parent=5 // pred_region
        %s848 = ssub.s32 %s19, 2
        // Predicated region
        $region65: #{tpu_custom_call.1} parent=63 // pred_check
          %p849 = pneg %p179
        $region66: #{tpu_custom_call.1} parent=63 // pred_check_branch
          %851 = sbr.rel (%p849) target = $region68
        $region67: #{tpu_custom_call.1} parent=63 // pred_region
          %s852 = sand.u32 %s164, 1
          %s853 = scalar_lea.sflag [#allocation4], %s852
          %s854 = sand.u32 %s164, 1
          %s855 = smul.addr %s854, 8
          %s856 = scalar_lea.vmem [#allocation8], %s855
          %857 = dma.done %s853, 128
        $region68: #{tpu_custom_call.1} parent=63 // pred_fallthru
          _
      $region64: #{tpu_custom_call.1} parent=5 // pred_fallthru
        _
    $region6: #{tpu_custom_call.1} parent=1 // loop_footer
      %s23 = sadd.s32 1, %s19
    $region7: #{tpu_custom_call.1} parent=1 // loop_footer_branch
      %18 = sbr.rel target = $region3
    $region8: #{tpu_custom_call.1} parent=1 // loop_exit
      _
    %858 = vsyncpa [#allocation3], 1
    %s859 = scalar_lea.sflag [#allocation3], 1
    %860 = vsyncpa %s859, 1
    %861 = vsyncpa [#allocation6], 1
    %862 = vsyncpa [#allocation4], 1
    %s863 = scalar_lea.sflag [#allocation4], 1
    %864 = vsyncpa %s863, 1

</llo_original>
